<compile_context>
chip_gen: v5e
topology: v5e:2x2
jax: 0.10.0
libtpu: 0.0.40
codegen_flags: <defaults>
</compile_context>

<pallas_src>
import jax
import jax.numpy as jnp
from jax.experimental import pallas as pl
from jax.experimental.pallas import tpu as pltpu


def im_layer_kernel(x_ref, y_ref, w1_ref, b1_ref, w2t_ref, wly_ref, wli_ref,
                    bl_ref, out_ref):
    cd = x_ref.dtype                      # matmul compute dtype (f32 or bf16)
    BB, m, H = x_ref.shape
    _, n, _ = y_ref.shape

    x = x_ref[...]                        # (BB, m, H), dtype cd
    y = y_ref[...]                        # (BB, n, H), f32

    # --- self-attentive pooling over m (MultiHeadSelfAtt) ---
    x2 = x.reshape(BB * m, H)             # leading-dim collapse (layout-free)
    proj = jnp.tanh(
        jnp.dot(x2, w1_ref[...], preferred_element_type=jnp.float32)
        + b1_ref[...])                                            # (BB*m, H) f32
    proj3 = proj.reshape(BB, m, H).astype(cd)

    # Lane-major scores (BB, 1, m): MXU batched matmul against broadcast w2^T.
    w2b = jnp.broadcast_to(w2t_ref[...].reshape(1, 1, H), (BB, 1, H))
    scores = jnp.einsum('bqh,bmh->bqm', w2b, proj3,
                        preferred_element_type=jnp.float32)       # (BB, 1, m)
    # NOTE: scalar bias b2 is a softmax invariant -> dropped.
    scores = scores - jnp.max(scores, axis=-1, keepdims=True)
    e = jnp.exp(scores)
    att = e * pl.reciprocal(jnp.sum(e, axis=-1, keepdims=True), approx=True)

    # pooled = att @ x  per batch, on the MXU.
    pooled = jnp.einsum('bqm,bmh->bqh', att.astype(cd), x,
                        preferred_element_type=jnp.float32)       # (BB, 1, H) f32

    # --- gate = sigmoid(Linear(cat([y, i_x]))), weight split into two matmuls ---
    y2 = y.astype(cd).reshape(BB * n, H)
    gate_y = jnp.dot(y2, wly_ref[...],
                     preferred_element_type=jnp.float32).reshape(BB, n, H)
    gate_i = jnp.dot(pooled.reshape(BB, H).astype(cd), wli_ref[...],
                     preferred_element_type=jnp.float32).reshape(BB, 1, H)
    gate = jax.nn.sigmoid(gate_y + gate_i + bl_ref[...])          # (BB, n, H)

    # --- output = y + i_x * gate  (pooled broadcasts (BB,1,H) -> (BB,n,H)) ---
    out_ref[...] = y + pooled * gate


def _pick_batch_block(b, m, n, H, target_rows=512, vmem_budget=8 * 1024 * 1024):
    """Batch elements per grid step: feed the MXU >=512 rows, fit VMEM, divide b."""
    bb = min(b, max(1, -(-target_rows // max(n, 1))))
    act_bytes = lambda k: 2 * k * (m + 2 * n) * H * 4   # double-buffered x/y/out
    while bb > 1 and (b % bb != 0 or act_bytes(bb) > vmem_budget):
        bb -= 1
    return bb


def im_layer(x, y, params, *, compute_dtype=jnp.float32):
    """x: (b, m, h), y: (b, n, h), f32 -> (b, n, h) f32."""
    b, m, h = x.shape
    _, n, _ = y.shape
    w1, b1, w2, b2, wly, wli, bl = params   # b2 unused in-kernel (softmax invariant)
    cd = compute_dtype

    # Lane-pad h to a multiple of 128 (zero padding is exact: padded columns of
    # x/y/weights are zero, so padded output columns are zero and are sliced off).
    H = ((h + 127) // 128) * 128

    def pad_last(a):
        ph = H - a.shape[-1]
        return a if ph == 0 else jnp.pad(a, [(0, 0)] * (a.ndim - 1) + [(0, ph)])

    def pad_sq(a):  # (h, h) -> (H, H)
        ph = H - h
        return a if ph == 0 else jnp.pad(a, ((0, ph), (0, ph)))

    x_p   = pad_last(x.astype(cd))
    y_p   = pad_last(y)                               # f32 (needed for residual)
    w1_p  = pad_sq(w1).astype(cd)
    b1_p  = pad_last(b1)                              # f32
    w2t_p = pad_last(w2.reshape(1, h)).astype(cd)     # stored transposed: (1, H)
    wly_p = pad_sq(wly).astype(cd)
    wli_p = pad_sq(wli).astype(cd)
    bl_p  = pad_last(bl)                              # f32

    BB = _pick_batch_block(b, m, n, H)
    grid = (b // BB,)

    # Raise the scoped-VMEM limit only when the footprint actually needs it.
    cd_bytes = jnp.dtype(cd).itemsize
    need = (2 * BB * (m * H * cd_bytes + 2 * n * H * 4)          # x, y, out (dbl-buf)
            + 2 * (3 * H * H + H) * cd_bytes + 2 * 2 * H * 4     # weights/biases
            + 6 * BB * max(m, n) * H * 4)                        # intermediates
    vmem_limit = None if need <= 30 * 1024 * 1024 else min(int(need * 5 // 4),
                                                           64 * 1024 * 1024)

    flops = int(2 * b * (m * h * h + 2 * m * h + n * h * h + h * h))
    transcendentals = int(b * (m * h + m + n * h))
    bytes_accessed = int(4 * (b * m * h + 2 * b * n * h + 3 * h * h + 3 * h + 1))

    grid_spec = pltpu.PrefetchScalarGridSpec(
        num_scalar_prefetch=0,
        grid=grid,
        in_specs=[
            pl.BlockSpec((BB, m, H), lambda i: (i, 0, 0)),   # x
            pl.BlockSpec((BB, n, H), lambda i: (i, 0, 0)),   # y
            pl.BlockSpec((H, H), lambda i: (0, 0)),          # W1
            pl.BlockSpec((1, H), lambda i: (0, 0)),          # b1
            pl.BlockSpec((1, H), lambda i: (0, 0)),          # w2^T
            pl.BlockSpec((H, H), lambda i: (0, 0)),          # Wl (y half)
            pl.BlockSpec((H, H), lambda i: (0, 0)),          # Wl (i_x half)
            pl.BlockSpec((1, H), lambda i: (0, 0)),          # bl
        ],
        out_specs=pl.BlockSpec((BB, n, H), lambda i: (i, 0, 0)),
    )

    out_p = pl.pallas_call(
        im_layer_kernel,
        out_shape=jax.ShapeDtypeStruct((b, n, H), jnp.float32),
        grid_spec=grid_spec,
        compiler_params=pltpu.CompilerParams(
            dimension_semantics=("parallel",),
            vmem_limit_bytes=vmem_limit),
        cost_estimate=pl.CostEstimate(flops=flops,
                                      transcendentals=transcendentals,
                                      bytes_accessed=bytes_accessed),
    )(x_p, y_p, w1_p, b1_p, w2t_p, wly_p, wli_p, bl_p)

    return out_p if H == h else out_p[..., :h]


def make_params(key, h):
    """Deterministic parameter init (shapes implied by IMLayer.__init__)."""
    ks = jax.random.split(key, 6)
    scale = 0.1
    w1 = scale * jax.random.normal(ks[0], (h, h), jnp.float32)      # attn proj
    b1 = scale * jax.random.normal(ks[1], (1, h), jnp.float32)
    w2 = scale * jax.random.normal(ks[2], (h, 1), jnp.float32)      # attn score
    b2 = scale * jax.random.normal(ks[3], (1, 1), jnp.float32)
    # nn.Linear(2h, h): weight (h, 2h); stored transposed and split.
    wl = scale * jax.random.normal(ks[4], (2 * h, h), jnp.float32)
    wly, wli = wl[:h], wl[h:]
    bl = scale * jax.random.normal(ks[5], (1, h), jnp.float32)
    return (w1, b1, w2, b2, wly, wli, bl)


def im_layer_ref(x, y, params):
    """Pure-JAX f32 reference."""
    w1, b1, w2, b2, wly, wli, bl = params
    proj = jnp.tanh(jnp.einsum('bmh,hk->bmk', x, w1) + b1)
    scores = jnp.einsum('bmk,ko->bmo', proj, w2) + b2                # (b,m,1)
    att = jax.nn.softmax(scores, axis=1)
    pooled = jnp.sum(att * x, axis=1)                                # (b,h)
    i_x = pooled[:, None, :]                                         # (b,1,h)
    gate = jax.nn.sigmoid(jnp.einsum('bnh,hk->bnk', y, wly)
                          + jnp.einsum('bih,hk->bik', i_x, wli) + bl)
    return y + i_x * gate


if __name__ == "__main__":
    b, m, n, h = 2, 8, 16, 32
    key = jax.random.PRNGKey(0)
    kx, ky, kp = jax.random.split(key, 3)
    x = jax.random.normal(kx, (b, m, h), jnp.float32)
    y = jax.random.normal(ky, (b, n, h), jnp.float32)
    params = make_params(kp, h)

    ref = im_layer_ref(x, y, params)

    # f32 matmul path (default; recommended on v5e).
    out = jax.block_until_ready(im_layer(x, y, params))
    assert out.shape == (b, n, h)
    assert jnp.allclose(out, ref, atol=3e-3, rtol=3e-3), \
        float(jnp.max(jnp.abs(out - ref)))

    # bf16 matmul inputs with f32 accumulation (recommended on v6e/v7x).
    out_bf16 = jax.block_until_ready(
        im_layer(x, y, params, compute_dtype=jnp.bfloat16))
    assert out_bf16.shape == (b, n, h)
    assert jnp.allclose(out_bf16, ref, atol=5e-2, rtol=5e-2), \
        float(jnp.max(jnp.abs(out_bf16 - ref)))

    print("KERNEL_OK")
</pallas_src>

<mosaic_0001>
module attributes {stable_mosaic.version = 11 : i64} {
  func.func @im_layer_kernel(%arg0: i32, %arg1: memref<2x8x128xf32, #tpu.memory_space<vmem>>, %arg2: memref<2x16x128xf32, #tpu.memory_space<vmem>>, %arg3: memref<128x128xf32, #tpu.memory_space<vmem>>, %arg4: memref<1x128xf32, #tpu.memory_space<vmem>>, %arg5: memref<1x128xf32, #tpu.memory_space<vmem>>, %arg6: memref<128x128xf32, #tpu.memory_space<vmem>>, %arg7: memref<128x128xf32, #tpu.memory_space<vmem>>, %arg8: memref<1x128xf32, #tpu.memory_space<vmem>>, %arg9: memref<2x16x128xf32, #tpu.memory_space<vmem>>) attributes {dimension_semantics = [#tpu.dimension_semantics<parallel>], iteration_bounds = array<i64: 1>, scalar_prefetch = 0 : i64, scratch_operands = 0 : i64, tpu.core_type = #tpu.core_type<tc>, window_params = [{transform_indices = @transform_0, window_bounds = array<i64: 2, 8, 128>}, {transform_indices = @transform_1, window_bounds = array<i64: 2, 16, 128>}, {pipeline_mode = #tpu.pipeline_mode<synchronous>, transform_indices = @transform_2, window_bounds = array<i64: 128, 128>}, {pipeline_mode = #tpu.pipeline_mode<synchronous>, transform_indices = @transform_3, window_bounds = array<i64: 1, 128>}, {pipeline_mode = #tpu.pipeline_mode<synchronous>, transform_indices = @transform_4, window_bounds = array<i64: 1, 128>}, {pipeline_mode = #tpu.pipeline_mode<synchronous>, transform_indices = @transform_5, window_bounds = array<i64: 128, 128>}, {pipeline_mode = #tpu.pipeline_mode<synchronous>, transform_indices = @transform_6, window_bounds = array<i64: 128, 128>}, {pipeline_mode = #tpu.pipeline_mode<synchronous>, transform_indices = @transform_7, window_bounds = array<i64: 1, 128>}, {transform_indices = @transform_8, window_bounds = array<i64: 2, 16, 128>}]} {
    %c0 = arith.constant 0 : index
    %c0_0 = arith.constant 0 : index
    %c0_1 = arith.constant 0 : index
    %0 = vector.load %arg1[%c0, %c0_0, %c0_1] : memref<2x8x128xf32, #tpu.memory_space<vmem>>, vector<2x8x128xf32>
    %c0_2 = arith.constant 0 : index
    %c0_3 = arith.constant 0 : index
    %c0_4 = arith.constant 0 : index
    %1 = vector.load %arg2[%c0_2, %c0_3, %c0_4] : memref<2x16x128xf32, #tpu.memory_space<vmem>>, vector<2x16x128xf32>
    %2 = vector.shape_cast %0 : vector<2x8x128xf32> to vector<16x128xf32>
    %c0_5 = arith.constant 0 : index
    %c0_6 = arith.constant 0 : index
    %3 = vector.load %arg3[%c0_5, %c0_6] : memref<128x128xf32, #tpu.memory_space<vmem>>, vector<128x128xf32>
    %cst = arith.constant dense<0.000000e+00> : vector<16x128xf32>
    %4 = tpu.matmul %2, %3, %cst {dimension_numbers = #tpu.dot_dimension_numbers<[1], [0], [0], [1], [0, 0, 1, 1], [], []>} : vector<16x128xf32>, vector<128x128xf32>, vector<16x128xf32> -> vector<16x128xf32>
    %c0_7 = arith.constant 0 : index
    %c0_8 = arith.constant 0 : index
    %5 = vector.load %arg4[%c0_7, %c0_8] : memref<1x128xf32, #tpu.memory_space<vmem>>, vector<1x128xf32>
    %6 = vector.broadcast %5 : vector<1x128xf32> to vector<16x128xf32>
    %7 = arith.addf %4, %6 : vector<16x128xf32>
    %8 = math.tanh %7 : vector<16x128xf32>
    %9 = vector.shape_cast %8 : vector<16x128xf32> to vector<2x8x128xf32>
    %c0_9 = arith.constant 0 : index
    %c0_10 = arith.constant 0 : index
    %10 = vector.load %arg5[%c0_9, %c0_10] : memref<1x128xf32, #tpu.memory_space<vmem>>, vector<1x128xf32>
    %11 = vector.shape_cast %10 : vector<1x128xf32> to vector<1x1x128xf32>
    %12 = vector.shape_cast %11 : vector<1x1x128xf32> to vector<1x1x128xf32>
    %13 = vector.broadcast %12 : vector<1x1x128xf32> to vector<2x1x128xf32>
    "tpu.trace_start"() <{level = 10 : i32, message = "bqh,bmh->bqm"}> : () -> ()
    %cst_11 = arith.constant dense<0.000000e+00> : vector<2x1x8xf32>
    %14 = tpu.matmul %13, %9, %cst_11 {dimension_numbers = #tpu.dot_dimension_numbers<[2], [2], [1], [1], [0, 0, 0, 1, 1, 1], [0], [0]>} : vector<2x1x128xf32>, vector<2x8x128xf32>, vector<2x1x8xf32> -> vector<2x1x8xf32>
    "tpu.trace_stop"() : () -> ()
    %cst_12 = arith.constant dense<0xFF800000> : vector<2x1xf32>
    %15 = vector.multi_reduction <maximumf>, %14, %cst_12 [2] : vector<2x1x8xf32> to vector<2x1xf32>
    %16 = vector.shape_cast %15 : vector<2x1xf32> to vector<2x1x1xf32>
    %17 = vector.broadcast %16 : vector<2x1x1xf32> to vector<2x1x8xf32>
    %18 = arith.subf %14, %17 : vector<2x1x8xf32>
    %19 = math.exp %18 : vector<2x1x8xf32>
    %cst_13 = arith.constant dense<0.000000e+00> : vector<2x1xf32>
    %20 = vector.multi_reduction <add>, %19, %cst_13 [2] : vector<2x1x8xf32> to vector<2x1xf32>
    %21 = vector.shape_cast %20 : vector<2x1xf32> to vector<2x1x1xf32>
    %22 = tpu.reciprocal %21 {approx = true} : vector<2x1x1xf32> -> vector<2x1x1xf32>
    %23 = vector.broadcast %22 : vector<2x1x1xf32> to vector<2x1x8xf32>
    %24 = arith.mulf %19, %23 : vector<2x1x8xf32>
    "tpu.trace_start"() <{level = 10 : i32, message = "bqm,bmh->bqh"}> : () -> ()
    %cst_14 = arith.constant dense<0.000000e+00> : vector<2x1x128xf32>
    %25 = tpu.matmul %24, %0, %cst_14 {dimension_numbers = #tpu.dot_dimension_numbers<[2], [1], [1], [2], [0, 0, 0, 1, 1, 2], [0], [0]>} : vector<2x1x8xf32>, vector<2x8x128xf32>, vector<2x1x128xf32> -> vector<2x1x128xf32>
    "tpu.trace_stop"() : () -> ()
    %26 = vector.shape_cast %1 : vector<2x16x128xf32> to vector<32x128xf32>
    %c0_15 = arith.constant 0 : index
    %c0_16 = arith.constant 0 : index
    %27 = vector.load %arg6[%c0_15, %c0_16] : memref<128x128xf32, #tpu.memory_space<vmem>>, vector<128x128xf32>
    %cst_17 = arith.constant dense<0.000000e+00> : vector<32x128xf32>
    %28 = tpu.matmul %26, %27, %cst_17 {dimension_numbers = #tpu.dot_dimension_numbers<[1], [0], [0], [1], [0, 0, 1, 1], [], []>} : vector<32x128xf32>, vector<128x128xf32>, vector<32x128xf32> -> vector<32x128xf32>
    %29 = vector.shape_cast %28 : vector<32x128xf32> to vector<2x16x128xf32>
    %30 = vector.shape_cast %25 : vector<2x1x128xf32> to vector<2x128xf32>
    %c0_18 = arith.constant 0 : index
    %c0_19 = arith.constant 0 : index
    %31 = vector.load %arg7[%c0_18, %c0_19] : memref<128x128xf32, #tpu.memory_space<vmem>>, vector<128x128xf32>
    %cst_20 = arith.constant dense<0.000000e+00> : vector<2x128xf32>
    %32 = tpu.matmul %30, %31, %cst_20 {dimension_numbers = #tpu.dot_dimension_numbers<[1], [0], [0], [1], [0, 0, 1, 1], [], []>} : vector<2x128xf32>, vector<128x128xf32>, vector<2x128xf32> -> vector<2x128xf32>
    %33 = vector.shape_cast %32 : vector<2x128xf32> to vector<2x1x128xf32>
    %34 = vector.broadcast %33 : vector<2x1x128xf32> to vector<2x16x128xf32>
    %35 = arith.addf %29, %34 : vector<2x16x128xf32>
    %c0_21 = arith.constant 0 : index
    %c0_22 = arith.constant 0 : index
    %36 = vector.load %arg8[%c0_21, %c0_22] : memref<1x128xf32, #tpu.memory_space<vmem>>, vector<1x128xf32>
    %37 = vector.shape_cast %36 : vector<1x128xf32> to vector<1x1x128xf32>
    %38 = vector.broadcast %37 : vector<1x1x128xf32> to vector<2x16x128xf32>
    %39 = arith.addf %35, %38 : vector<2x16x128xf32>
    %40 = arith.negf %39 : vector<2x16x128xf32>
    %41 = math.exp %40 : vector<2x16x128xf32>
    %cst_23 = arith.constant 1.000000e+00 : f32
    %42 = vector.broadcast %cst_23 : f32 to vector<2x16x128xf32>
    %43 = arith.addf %42, %41 : vector<2x16x128xf32>
    %44 = arith.divf %42, %43 : vector<2x16x128xf32>
    %45 = vector.broadcast %25 : vector<2x1x128xf32> to vector<2x16x128xf32>
    %46 = arith.mulf %45, %44 : vector<2x16x128xf32>
    %47 = arith.addf %1, %46 : vector<2x16x128xf32>
    %c0_24 = arith.constant 0 : index
    %c0_25 = arith.constant 0 : index
    %c0_26 = arith.constant 0 : index
    %48 = vector.load %arg9[%c0_24, %c0_25, %c0_26] : memref<2x16x128xf32, #tpu.memory_space<vmem>>, vector<2x16x128xf32>
    tpu.vector_store %arg9[%c0_24, %c0_25, %c0_26], %47 {strides = array<i32>} : memref<2x16x128xf32, #tpu.memory_space<vmem>>, vector<2x16x128xf32>,
    return
  }
  func.func @transform_0(%arg0: i32) -> (i32, i32, i32) {
    %c0_i32 = arith.constant 0 : i32
    %c0_i32_0 = arith.constant 0 : i32
    %c0_i32_1 = arith.constant 0 : i32
    return %arg0, %c0_i32, %c0_i32_0 : i32, i32, i32
  }
  func.func @transform_1(%arg0: i32) -> (i32, i32, i32) {
    %c0_i32 = arith.constant 0 : i32
    %c0_i32_0 = arith.constant 0 : i32
    %c0_i32_1 = arith.constant 0 : i32
    return %arg0, %c0_i32, %c0_i32_0 : i32, i32, i32
  }
  func.func @transform_2(%arg0: i32) -> (i32, i32) {
    %c0_i32 = arith.constant 0 : i32
    %c0_i32_0 = arith.constant 0 : i32
    %c0_i32_1 = arith.constant 0 : i32
    return %c0_i32, %c0_i32_0 : i32, i32
  }
  func.func @transform_3(%arg0: i32) -> (i32, i32) {
    %c0_i32 = arith.constant 0 : i32
    %c0_i32_0 = arith.constant 0 : i32
    %c0_i32_1 = arith.constant 0 : i32
    return %c0_i32, %c0_i32_0 : i32, i32
  }
  func.func @transform_4(%arg0: i32) -> (i32, i32) {
    %c0_i32 = arith.constant 0 : i32
    %c0_i32_0 = arith.constant 0 : i32
    %c0_i32_1 = arith.constant 0 : i32
    return %c0_i32, %c0_i32_0 : i32, i32
  }
  func.func @transform_5(%arg0: i32) -> (i32, i32) {
    %c0_i32 = arith.constant 0 : i32
    %c0_i32_0 = arith.constant 0 : i32
    %c0_i32_1 = arith.constant 0 : i32
    return %c0_i32, %c0_i32_0 : i32, i32
  }
  func.func @transform_6(%arg0: i32) -> (i32, i32) {
    %c0_i32 = arith.constant 0 : i32
    %c0_i32_0 = arith.constant 0 : i32
    %c0_i32_1 = arith.constant 0 : i32
    return %c0_i32, %c0_i32_0 : i32, i32
  }
  func.func @transform_7(%arg0: i32) -> (i32, i32) {
    %c0_i32 = arith.constant 0 : i32
    %c0_i32_0 = arith.constant 0 : i32
    %c0_i32_1 = arith.constant 0 : i32
    return %c0_i32, %c0_i32_0 : i32, i32
  }
  func.func @transform_8(%arg0: i32) -> (i32, i32, i32) {
    %c0_i32 = arith.constant 0 : i32
    %c0_i32_0 = arith.constant 0 : i32
    %c0_i32_1 = arith.constant 0 : i32
    return %arg0, %c0_i32, %c0_i32_0 : i32, i32, i32
  }
}

</mosaic_0001>

<llo_original>
// kernel: tpu_custom_call.1
$region0: #{tpu_custom_call.1}
  #allocation0 [shape = 'u32[]', space=smem, size = 0x4, offset = 0x4, fixed_abs, tag = 'smem constant byte address 0x4 - core index']
  #allocation1 [shape = 'u32[72,128]{1,0:T(1,128)}', space=vmem, size = 0x9000, scoped, tag = 'internal scratch']
  %s0 = inlined_call_operand.hbm [shape: f32[2,8,128], index: 0, kind: input, shape index: {}]
  %s1 = inlined_call_operand.hbm [shape: f32[2,16,128], index: 1, kind: input, shape index: {}]
  %s2 = inlined_call_operand.hbm [shape: f32[128,128], index: 2, kind: input, shape index: {}]
  %s3 = inlined_call_operand.vmem [shape: f32[1,128], index: 3, kind: input, shape index: {}]
  %s4 = inlined_call_operand.vmem [shape: f32[1,128], index: 4, kind: input, shape index: {}]
  %s5 = inlined_call_operand.hbm [shape: f32[128,128], index: 5, kind: input, shape index: {}]
  %s6 = inlined_call_operand.hbm [shape: f32[128,128], index: 6, kind: input, shape index: {}]
  %s7 = inlined_call_operand.vmem [shape: f32[1,128], index: 7, kind: input, shape index: {}]
  %s8 = inlined_call_operand.hbm [shape: f32[2,16,128], index: 8, kind: output, shape index: {}]
  %s9 = sld [smem:[#allocation0]]
  $region62: #{tpu_custom_call.1} parent=0
    _
  %s11 = ssub.s32 1, %s9
  %s12 = scalar_select 0, %s11, %s9
  $region1: #{tpu_custom_call.1} parent=0
    #allocation2 [shape = 'u8[8192]{0}', space=vmem, size = 0x2000, scoped, tag = 'input window, operand 0, single buffered']
    #allocation3 [shape = 's32[1]{0}', space=sflag, size = 0x4, scoped, tag = 'scoped memory for tpu_custom_call.1']
    #allocation4 [shape = 's32[1]{0}', space=sflag, size = 0x4, scoped, tag = 'scoped memory for tpu_custom_call.1']
    #allocation5 [shape = 'u8[16384]{0}', space=vmem, size = 0x4000, scoped, tag = 'input window, operand 1, single buffered']
    #allocation6 [shape = 's32[1]{0}', space=sflag, size = 0x4, scoped, tag = 'scoped memory for tpu_custom_call.1']
    #allocation7 [shape = 'u8[65536]{0}', space=vmem, size = 0x10000, scoped, tag = 'input window, operand 2, single buffered']
    #allocation8 [shape = 'u8[65536]{0}', space=vmem, size = 0x10000, scoped, tag = 'input window, operand 5, single buffered']
    #allocation9 [shape = 's32[1]{0}', space=sflag, size = 0x4, scoped, tag = 'scoped memory for tpu_custom_call.1']
    #allocation10 [shape = 'u8[65536]{0}', space=vmem, size = 0x10000, scoped, tag = 'input window, operand 6, single buffered']
    #allocation11 [shape = 'u8[16384]{0}', space=vmem, size = 0x4000, scoped, tag = 'output window, operand 0, single buffered']
    %13 = vsyncpa [#allocation3], 0
    %14 = vsyncpa [#allocation6], 0
    %15 = vsyncpa [#allocation9], 0
    %16 = vsyncpa [#allocation4], 0
    // Predicated region
    $region2: #{tpu_custom_call.1} parent=1 // pred_check
      _
    $region3: #{tpu_custom_call.1} parent=1 // pred_check_branch
      %18 = sbr.rel (0) target = $region5
    $region4: #{tpu_custom_call.1} parent=1 // pred_region
      %20 = vsyncadd [#allocation3], 0
      %s21 = sshll.u32 %s0, 4
      %s22 = int_to_ptr.hbm [resolvable:$true] %s21
      %s23 = sshll.u32 [#allocation2], 4
      %s24 = int_to_ptr.vmem [resolvable:$true] %s23
      %29 = dma.hbm_to_vmem [thread:$0]  %s22, 256, %s24, [#allocation3], 128, 128, 8
    $region5: #{tpu_custom_call.1} parent=1 // pred_fallthru
      _
    // Predicated region
    $region6: #{tpu_custom_call.1} parent=1 // pred_check
      _
    $region7: #{tpu_custom_call.1} parent=1 // pred_check_branch
      %31 = sbr.rel (0) target = $region9
    $region8: #{tpu_custom_call.1} parent=1 // pred_region
      %33 = vsyncadd [#allocation6], 0
      %s34 = sshll.u32 %s1, 4
      %s35 = int_to_ptr.hbm [resolvable:$true] %s34
      %s36 = sshll.u32 [#allocation5], 4
      %s37 = int_to_ptr.vmem [resolvable:$true] %s36
      %42 = dma.hbm_to_vmem [thread:$0]  %s35, 512, %s37, [#allocation6], 128, 128, 8
    $region9: #{tpu_custom_call.1} parent=1 // pred_fallthru
      _
    // Predicated region
    $region10: #{tpu_custom_call.1} parent=1 // pred_check
      _
    $region11: #{tpu_custom_call.1} parent=1 // pred_check_branch
      %44 = sbr.rel (0) target = $region13
    $region12: #{tpu_custom_call.1} parent=1 // pred_region
      %46 = vsyncadd [#allocation6], 0
      %s47 = sshll.u32 %s2, 4
      %s48 = int_to_ptr.hbm [resolvable:$true] %s47
      %s49 = sshll.u32 [#allocation7], 4
      %s50 = int_to_ptr.vmem [resolvable:$true] %s49
      %55 = dma.hbm_to_vmem [thread:$0]  %s48, 2048, %s50, [#allocation6], 128, 128, 8
    $region13: #{tpu_custom_call.1} parent=1 // pred_fallthru
      _
    // Predicated region
    $region14: #{tpu_custom_call.1} parent=1 // pred_check
      _
    $region15: #{tpu_custom_call.1} parent=1 // pred_check_branch
      %57 = sbr.rel (0) target = $region17
    $region16: #{tpu_custom_call.1} parent=1 // pred_region
      _
    $region17: #{tpu_custom_call.1} parent=1 // pred_fallthru
      _
    // Predicated region
    $region18: #{tpu_custom_call.1} parent=1 // pred_check
      _
    $region19: #{tpu_custom_call.1} parent=1 // pred_check_branch
      %59 = sbr.rel (0) target = $region21
    $region20: #{tpu_custom_call.1} parent=1 // pred_region
      _
    $region21: #{tpu_custom_call.1} parent=1 // pred_fallthru
      _
    // Predicated region
    $region22: #{tpu_custom_call.1} parent=1 // pred_check
      _
    $region23: #{tpu_custom_call.1} parent=1 // pred_check_branch
      %61 = sbr.rel (0) target = $region25
    $region24: #{tpu_custom_call.1} parent=1 // pred_region
      %63 = vsyncadd [#allocation9], 0
      %s64 = sshll.u32 %s5, 4
      %s65 = int_to_ptr.hbm [resolvable:$true] %s64
      %s66 = sshll.u32 [#allocation8], 4
      %s67 = int_to_ptr.vmem [resolvable:$true] %s66
      %72 = dma.hbm_to_vmem [thread:$0]  %s65, 2048, %s67, [#allocation9], 128, 128, 8
    $region25: #{tpu_custom_call.1} parent=1 // pred_fallthru
      _
    // Predicated region
    $region26: #{tpu_custom_call.1} parent=1 // pred_check
      _
    $region27: #{tpu_custom_call.1} parent=1 // pred_check_branch
      %74 = sbr.rel (0) target = $region29
    $region28: #{tpu_custom_call.1} parent=1 // pred_region
      %76 = vsyncadd [#allocation9], 0
      %s77 = sshll.u32 %s6, 4
      %s78 = int_to_ptr.hbm [resolvable:$true] %s77
      %s79 = sshll.u32 [#allocation10], 4
      %s80 = int_to_ptr.vmem [resolvable:$true] %s79
      %85 = dma.hbm_to_vmem [thread:$0]  %s78, 2048, %s80, [#allocation9], 128, 128, 8
    $region29: #{tpu_custom_call.1} parent=1 // pred_fallthru
      _
    // Predicated region
    $region30: #{tpu_custom_call.1} parent=1 // pred_check
      _
    $region31: #{tpu_custom_call.1} parent=1 // pred_check_branch
      %87 = sbr.rel (0) target = $region33
    $region32: #{tpu_custom_call.1} parent=1 // pred_region
      _
    $region33: #{tpu_custom_call.1} parent=1 // pred_fallthru
      _
    // Predicated region
    $region34: #{tpu_custom_call.1} parent=1 // pred_check
      _
    $region35: #{tpu_custom_call.1} parent=1 // pred_check_branch
      %89 = sbr.rel (0) target = $region37
    $region36: #{tpu_custom_call.1} parent=1 // pred_region
      %91 = dma.done [#allocation3], 256
    $region37: #{tpu_custom_call.1} parent=1 // pred_fallthru
      _
    // Predicated region
    $region38: #{tpu_custom_call.1} parent=1 // pred_check
      _
    $region39: #{tpu_custom_call.1} parent=1 // pred_check_branch
      %93 = sbr.rel (0) target = $region41
    $region40: #{tpu_custom_call.1} parent=1 // pred_region
      %95 = dma.done [#allocation6], 512
    $region41: #{tpu_custom_call.1} parent=1 // pred_fallthru
      _
    // Predicated region
    $region42: #{tpu_custom_call.1} parent=1 // pred_check
      _
    $region43: #{tpu_custom_call.1} parent=1 // pred_check_branch
      %97 = sbr.rel (0) target = $region45
    $region44: #{tpu_custom_call.1} parent=1 // pred_region
      %99 = dma.done [#allocation6], 2048
    $region45: #{tpu_custom_call.1} parent=1 // pred_fallthru
      _
    // Predicated region
    $region46: #{tpu_custom_call.1} parent=1 // pred_check
      _
    $region47: #{tpu_custom_call.1} parent=1 // pred_check_branch
      %101 = sbr.rel (0) target = $region49
    $region48: #{tpu_custom_call.1} parent=1 // pred_region
      %103 = dma.done [#allocation9], 2048
    $region49: #{tpu_custom_call.1} parent=1 // pred_fallthru
      _
    // Predicated region
    $region50: #{tpu_custom_call.1} parent=1 // pred_check
      _
    $region51: #{tpu_custom_call.1} parent=1 // pred_check_branch
      %105 = sbr.rel (0) target = $region53
    $region52: #{tpu_custom_call.1} parent=1 // pred_region
      %107 = dma.done [#allocation9], 2048
    $region53: #{tpu_custom_call.1} parent=1 // pred_fallthru
      _
    %v108 = vld [vmem:[#allocation2] sm:$0xff]
    %v109 = vld [vmem:[#allocation2 + $0x8] sm:$0xff]
    %v110 = vld [vmem:[#allocation5] sm:$0xff]
    %v111 = vld [vmem:[#allocation5 + $0x8] sm:$0xff]
    %v112 = vld [vmem:[#allocation5 + $0x10] sm:$0xff]
    %v113 = vld [vmem:[#allocation5 + $0x18] sm:$0xff]
    %v114 = vld [vmem:[#allocation7] sm:$0xff]
    %v115 = vld [vmem:[#allocation7 + $0x8] sm:$0xff]
    %v116 = vld [vmem:[#allocation7 + $0x10] sm:$0xff]
    %v117 = vld [vmem:[#allocation7 + $0x18] sm:$0xff]
    %v118 = vld [vmem:[#allocation7 + $0x20] sm:$0xff]
    %v119 = vld [vmem:[#allocation7 + $0x28] sm:$0xff]
    %v120 = vld [vmem:[#allocation7 + $0x30] sm:$0xff]
    %v121 = vld [vmem:[#allocation7 + $0x38] sm:$0xff]
    %v122 = vld [vmem:[#allocation7 + $0x40] sm:$0xff]
    %v123 = vld [vmem:[#allocation7 + $0x48] sm:$0xff]
    %v124 = vld [vmem:[#allocation7 + $0x50] sm:$0xff]
    %v125 = vld [vmem:[#allocation7 + $0x58] sm:$0xff]
    %v126 = vld [vmem:[#allocation7 + $0x60] sm:$0xff]
    %v127 = vld [vmem:[#allocation7 + $0x68] sm:$0xff]
    %v128 = vld [vmem:[#allocation7 + $0x70] sm:$0xff]
    %v129 = vld [vmem:[#allocation7 + $0x78] sm:$0xff]
    %v130 = vld [vmem:[%s3] sm:$0x1]
    %v132 = vperm.slane %v130, 0
    %134 = vmatpush.msra.mxu0 %v129
    %135 = vmatpush.msra.mxu0 %v128
    %136 = vmatpush.msra.mxu0 %v127
    %137 = vmatpush.msra.mxu0 %v126
    %138 = vmatpush.msra.mxu0 %v125
    %139 = vmatpush.msra.mxu0 %v124
    %140 = vmatpush.msra.mxu0 %v123
    %141 = vmatpush.msra.mxu0 %v122
    %142 = vmatpush.msra.mxu0 %v121
    %143 = vmatpush.msra.mxu0 %v120
    %144 = vmatpush.msra.mxu0 %v119
    %145 = vmatpush.msra.mxu0 %v118
    %146 = vmatpush.msra.mxu0 %v117
    %147 = vmatpush.msra.mxu0 %v116
    %148 = vmatpush.msra.mxu0 %v115
    %149 = vmatpush.msra.mxu0 %v114
    %150 = vmatmul.f32.gmra.mxu0 %v108
    %v151 = vpop.f32.mrf.mxu0
    %v152 = vadd.f32 %v132, %v151
    %153 = vmatmul.f32.gmra.mxu0 %v109
    %v154 = vpop.f32.mrf.mxu0
    %v155 = vadd.f32 %v132, %v154
    %156 = vdwg.mxu0
    %v157 = vtanh.pop %v152
    %v158 = vtanh.pop %v155
    %v159 = vld [vmem:[%s4] sm:$0x1]
    %160 = vmatpush.xpose.msra.mxu0 0.0
    %161 = vmatpush.xpose.msra.mxu0 0.0
    %162 = vmatpush.xpose.msra.mxu0 0.0
    %163 = vmatpush.xpose.msra.mxu0 0.0
    %164 = vmatpush.xpose.msra.mxu0 0.0
    %165 = vmatpush.xpose.msra.mxu0 0.0
    %166 = vmatpush.xpose.msra.mxu0 0.0
    %167 = vmatpush.xpose.msra.mxu0 0.0
    %168 = vmatpush.xpose.msra.mxu0 0.0
    %169 = vmatpush.xpose.msra.mxu0 0.0
    %170 = vmatpush.xpose.msra.mxu0 0.0
    %171 = vmatpush.xpose.msra.mxu0 0.0
    %172 = vmatpush.xpose.msra.mxu0 0.0
    %173 = vmatpush.xpose.msra.mxu0 0.0
    %174 = vmatpush.xpose.msra.mxu0 0.0
    %175 = vmatpush.xpose.msra.mxu0 %v157
    %176 = vmatmul.f32.gmra.mxu0 %v159
    %v177 = vpop.f32.mrf.mxu0
    %v178 = vadd.f32 0.0, %v177
    %179 = vdwg.mxu0
    %180 = vmatpush.xpose.msra.mxu0 0.0
    %181 = vmatpush.xpose.msra.mxu0 0.0
    %182 = vmatpush.xpose.msra.mxu0 0.0
    %183 = vmatpush.xpose.msra.mxu0 0.0
    %184 = vmatpush.xpose.msra.mxu0 0.0
    %185 = vmatpush.xpose.msra.mxu0 0.0
    %186 = vmatpush.xpose.msra.mxu0 0.0
    %187 = vmatpush.xpose.msra.mxu0 0.0
    %188 = vmatpush.xpose.msra.mxu0 0.0
    %189 = vmatpush.xpose.msra.mxu0 0.0
    %190 = vmatpush.xpose.msra.mxu0 0.0
    %191 = vmatpush.xpose.msra.mxu0 0.0
    %192 = vmatpush.xpose.msra.mxu0 0.0
    %193 = vmatpush.xpose.msra.mxu0 0.0
    %194 = vmatpush.xpose.msra.mxu0 0.0
    %195 = vmatpush.xpose.msra.mxu0 %v158
    %196 = vmatmul.f32.gmra.mxu0 %v159
    %v197 = vpop.f32.mrf.mxu0
    %v198 = vadd.f32 0.0, %v197
    %199 = vdwg.mxu0
    %vm200 = vcmask 57344
    %v201 = vsel %vm200, %v178, -inf
    %202 = vmax.xlane.f32.xlu0 %v201
    %v203 = vpop.xlane.xlu0 %202
    %v204 = vsel %vm200, %v198, -inf
    %205 = vmax.xlane.f32.xlu0 %v204
    %v206 = vpop.xlane.xlu0 %205
    %v207 = vsub.f32 %v178, %v203
    %v208 = vsub.f32 %v198, %v206
    %v209 = vmul.f32 %v207, 1.442695
    %v210 = vpow.pop %v209
    %v211 = vmul.f32 %v208, 1.442695
    %v212 = vpow.pop %v211
    %v213 = vsel %vm200, %v210, 0.0
    %214 = vadd.xlane.f32.xlu0 %v213
    %v215 = vpop.xlane.xlu0 %214
    %v216 = vsel %vm200, %v212, 0.0
    %217 = vadd.xlane.f32.xlu0 %v216
    %v218 = vpop.xlane.xlu0 %217
    %v219 = vrcp.pop %v215
    %v220 = vrcp.pop %v218
    %v221 = vmul.f32 %v210, %v219
    %v222 = vmul.f32 %v212, %v220
    %vm223 = vcmask 64512
    %v225 = vsel %vm223, %v221, 0
    %227 = vmatpush.msra.mxu0 0.0
    %228 = vmatpush.msra.mxu0 0.0
    %229 = vmatpush.msra.mxu0 0.0
    %230 = vmatpush.msra.mxu0 0.0
    %231 = vmatpush.msra.mxu0 0.0
    %232 = vmatpush.msra.mxu0 0.0
    %233 = vmatpush.msra.mxu0 0.0
    %234 = vmatpush.msra.mxu0 0.0
    %235 = vmatpush.msra.mxu0 0.0
    %236 = vmatpush.msra.mxu0 0.0
    %237 = vmatpush.msra.mxu0 0.0
    %238 = vmatpush.msra.mxu0 0.0
    %239 = vmatpush.msra.mxu0 0.0
    %240 = vmatpush.msra.mxu0 0.0
    %241 = vmatpush.msra.mxu0 0.0
    %242 = vmatpush.msra.mxu0 %v108
    %243 = vmatmul.f32.gmra.mxu0 %v225
    %v244 = vpop.f32.mrf.mxu0
    %v245 = vadd.f32 0.0, %v244
    %246 = vdwg.mxu0
    %v248 = vsel %vm223, %v222, 0
    %250 = vmatpush.msra.mxu0 0.0
    %251 = vmatpush.msra.mxu0 0.0
    %252 = vmatpush.msra.mxu0 0.0
    %253 = vmatpush.msra.mxu0 0.0
    %254 = vmatpush.msra.mxu0 0.0
    %255 = vmatpush.msra.mxu0 0.0
    %256 = vmatpush.msra.mxu0 0.0
    %257 = vmatpush.msra.mxu0 0.0
    %258 = vmatpush.msra.mxu0 0.0
    %259 = vmatpush.msra.mxu0 0.0
    %260 = vmatpush.msra.mxu0 0.0
    %261 = vmatpush.msra.mxu0 0.0
    %262 = vmatpush.msra.mxu0 0.0
    %263 = vmatpush.msra.mxu0 0.0
    %264 = vmatpush.msra.mxu0 0.0
    %265 = vmatpush.msra.mxu0 %v109
    %266 = vmatmul.f32.gmra.mxu0 %v248
    %v267 = vpop.f32.mrf.mxu0
    %v268 = vadd.f32 0.0, %v267
    %269 = vdwg.mxu0
    %v270 = vld [vmem:[#allocation8] sm:$0xff]
    %v271 = vld [vmem:[#allocation8 + $0x8] sm:$0xff]
    %v272 = vld [vmem:[#allocation8 + $0x10] sm:$0xff]
    %v273 = vld [vmem:[#allocation8 + $0x18] sm:$0xff]
    %v274 = vld [vmem:[#allocation8 + $0x20] sm:$0xff]
    %v275 = vld [vmem:[#allocation8 + $0x28] sm:$0xff]
    %v276 = vld [vmem:[#allocation8 + $0x30] sm:$0xff]
    %v277 = vld [vmem:[#allocation8 + $0x38] sm:$0xff]
    %v278 = vld [vmem:[#allocation8 + $0x40] sm:$0xff]
    %v279 = vld [vmem:[#allocation8 + $0x48] sm:$0xff]
    %v280 = vld [vmem:[#allocation8 + $0x50] sm:$0xff]
    %v281 = vld [vmem:[#allocation8 + $0x58] sm:$0xff]
    %v282 = vld [vmem:[#allocation8 + $0x60] sm:$0xff]
    %v283 = vld [vmem:[#allocation8 + $0x68] sm:$0xff]
    %v284 = vld [vmem:[#allocation8 + $0x70] sm:$0xff]
    %v285 = vld [vmem:[#allocation8 + $0x78] sm:$0xff]
    %286 = vmatpush.msra.mxu0 %v285
    %287 = vmatpush.msra.mxu0 %v284
    %288 = vmatpush.msra.mxu0 %v283
    %289 = vmatpush.msra.mxu0 %v282
    %290 = vmatpush.msra.mxu0 %v281
    %291 = vmatpush.msra.mxu0 %v280
    %292 = vmatpush.msra.mxu0 %v279
    %293 = vmatpush.msra.mxu0 %v278
    %294 = vmatpush.msra.mxu0 %v277
    %295 = vmatpush.msra.mxu0 %v276
    %296 = vmatpush.msra.mxu0 %v275
    %297 = vmatpush.msra.mxu0 %v274
    %298 = vmatpush.msra.mxu0 %v273
    %299 = vmatpush.msra.mxu0 %v272
    %300 = vmatpush.msra.mxu0 %v271
    %301 = vmatpush.msra.mxu0 %v270
    %302 = vmatmul.f32.gmra.mxu0 %v110
    %v303 = vpop.f32.mrf.mxu0
    %v304 = vadd.f32 0.0, %v303
    %305 = vmatmul.f32.gmra.mxu0 %v111
    %v306 = vpop.f32.mrf.mxu0
    %v307 = vadd.f32 0.0, %v306
    %308 = vmatmul.f32.gmra.mxu0 %v112
    %v309 = vpop.f32.mrf.mxu0
    %v310 = vadd.f32 0.0, %v309
    %311 = vmatmul.f32.gmra.mxu0 %v113
    %v312 = vpop.f32.mrf.mxu0
    %v313 = vadd.f32 0.0, %v312
    %314 = vdwg.mxu0
    %v315 = vld [vmem:[#allocation10] sm:$0xff]
    %v316 = vld [vmem:[#allocation10 + $0x8] sm:$0xff]
    %v317 = vld [vmem:[#allocation10 + $0x10] sm:$0xff]
    %v318 = vld [vmem:[#allocation10 + $0x18] sm:$0xff]
    %v319 = vld [vmem:[#allocation10 + $0x20] sm:$0xff]
    %v320 = vld [vmem:[#allocation10 + $0x28] sm:$0xff]
    %v321 = vld [vmem:[#allocation10 + $0x30] sm:$0xff]
    %v322 = vld [vmem:[#allocation10 + $0x38] sm:$0xff]
    %v323 = vld [vmem:[#allocation10 + $0x40] sm:$0xff]
    %v324 = vld [vmem:[#allocation10 + $0x48] sm:$0xff]
    %v325 = vld [vmem:[#allocation10 + $0x50] sm:$0xff]
    %v326 = vld [vmem:[#allocation10 + $0x58] sm:$0xff]
    %v327 = vld [vmem:[#allocation10 + $0x60] sm:$0xff]
    %v328 = vld [vmem:[#allocation10 + $0x68] sm:$0xff]
    %v329 = vld [vmem:[#allocation10 + $0x70] sm:$0xff]
    %v330 = vld [vmem:[#allocation10 + $0x78] sm:$0xff]
    %v333 = vrot.slane %v268, 7
    %vm334 = vcmask 1041409
    %v335 = vsel %vm334, %v333, %v245
    %337 = vmatpush.msra.mxu0 %v330
    %338 = vmatpush.msra.mxu0 %v329
    %339 = vmatpush.msra.mxu0 %v328
    %340 = vmatpush.msra.mxu0 %v327
    %341 = vmatpush.msra.mxu0 %v326
    %342 = vmatpush.msra.mxu0 %v325
    %343 = vmatpush.msra.mxu0 %v324
    %344 = vmatpush.msra.mxu0 %v323
    %345 = vmatpush.msra.mxu0 %v322
    %346 = vmatpush.msra.mxu0 %v321
    %347 = vmatpush.msra.mxu0 %v320
    %348 = vmatpush.msra.mxu0 %v319
    %349 = vmatpush.msra.mxu0 %v318
    %350 = vmatpush.msra.mxu0 %v317
    %351 = vmatpush.msra.mxu0 %v316
    %352 = vmatpush.msra.mxu0 %v315
    %353 = vmatmul.f32.gmra.mxu0 %v335
    %v354 = vpop.f32.mrf.mxu0
    %v355 = vadd.f32 0.0, %v354
    %356 = vdwg.mxu0
    %v358 = vrot.slane %v355, 1
    %v359 = vperm.slane %v355, 0
    %v360 = vperm.slane %v358, 0
    %v363 = vadd.f32 %v304, %v359
    %v364 = vadd.f32 %v307, %v359
    %v365 = vadd.f32 %v310, %v360
    %v366 = vadd.f32 %v313, %v360
    %v367 = vld [vmem:[%s7] sm:$0x1]
    %v369 = vperm.slane %v367, 0
    %v371 = vadd.f32 %v363, %v369
    %v372 = vadd.f32 %v364, %v369
    %v373 = vadd.f32 %v365, %v369
    %v374 = vadd.f32 %v366, %v369
    %v375 = vxor.u32 %v371, 2147483648
    %v376 = vxor.u32 %v372, 2147483648
    %v377 = vxor.u32 %v373, 2147483648
    %v378 = vxor.u32 %v374, 2147483648
    %v379 = vmul.f32 %v375, 1.442695
    %v380 = vpow.pop %v379
    %v381 = vmul.f32 %v376, 1.442695
    %v382 = vpow.pop %v381
    %v383 = vmul.f32 %v377, 1.442695
    %v384 = vpow.pop %v383
    %v385 = vmul.f32 %v378, 1.442695
    %v386 = vpow.pop %v385
    %v387 = vadd.f32 %v380, 1.0
    %v388 = vadd.f32 %v382, 1.0
    %v389 = vadd.f32 %v384, 1.0
    %v390 = vadd.f32 %v386, 1.0
    %v391 = vrcp.pop %v387
    %v392 = vmul.f32 %v387, %v391
    %v393 = vsub.f32 1.0, %v392
    %v394 = vmul.f32 %v391, %v393
    %v395 = vadd.f32 %v391, %v394
    %vm396 = vweird.f32 %v387
    %vm397 = vweird.f32 %v391
    %vm398 = vmor %vm396, %vm397
    %v399 = vsel %vm398, %v391, %v395
    %v400 = vand.u32 2147483647, %v387
    %vm401 = vcmp.eq.f32.partialorder %v400, 8.507059e+37
    %v402 = vand.u32 %v387, 2147483648
    %v403 = vor.u32 1.1754944e-38, %v402
    %v404 = vsel %vm401, %v403, %v399
    %v405 = vmul.f32 1.0, %v404
    %v406 = vrcp.pop %v388
    %v407 = vmul.f32 %v388, %v406
    %v408 = vsub.f32 1.0, %v407
    %v409 = vmul.f32 %v406, %v408
    %v410 = vadd.f32 %v406, %v409
    %vm411 = vweird.f32 %v388
    %vm412 = vweird.f32 %v406
    %vm413 = vmor %vm411, %vm412
    %v414 = vsel %vm413, %v406, %v410
    %v415 = vand.u32 2147483647, %v388
    %vm416 = vcmp.eq.f32.partialorder %v415, 8.507059e+37
    %v417 = vand.u32 %v388, 2147483648
    %v418 = vor.u32 1.1754944e-38, %v417
    %v419 = vsel %vm416, %v418, %v414
    %v420 = vmul.f32 1.0, %v419
    %v421 = vrcp.pop %v389
    %v422 = vmul.f32 %v389, %v421
    %v423 = vsub.f32 1.0, %v422
    %v424 = vmul.f32 %v421, %v423
    %v425 = vadd.f32 %v421, %v424
    %vm426 = vweird.f32 %v389
    %vm427 = vweird.f32 %v421
    %vm428 = vmor %vm426, %vm427
    %v429 = vsel %vm428, %v421, %v425
    %v430 = vand.u32 2147483647, %v389
    %vm431 = vcmp.eq.f32.partialorder %v430, 8.507059e+37
    %v432 = vand.u32 %v389, 2147483648
    %v433 = vor.u32 1.1754944e-38, %v432
    %v434 = vsel %vm431, %v433, %v429
    %v435 = vmul.f32 1.0, %v434
    %v436 = vrcp.pop %v390
    %v437 = vmul.f32 %v390, %v436
    %v438 = vsub.f32 1.0, %v437
    %v439 = vmul.f32 %v436, %v438
    %v440 = vadd.f32 %v436, %v439
    %vm441 = vweird.f32 %v390
    %vm442 = vweird.f32 %v436
    %vm443 = vmor %vm441, %vm442
    %v444 = vsel %vm443, %v436, %v440
    %v445 = vand.u32 2147483647, %v390
    %vm446 = vcmp.eq.f32.partialorder %v445, 8.507059e+37
    %v447 = vand.u32 %v390, 2147483648
    %v448 = vor.u32 1.1754944e-38, %v447
    %v449 = vsel %vm446, %v448, %v444
    %v450 = vmul.f32 1.0, %v449
    %v451 = vperm.slane %v245, 0
    %v452 = vperm.slane %v268, 0
    %v453 = vmul.f32 %v451, %v405
    %v454 = vmul.f32 %v451, %v420
    %v455 = vmul.f32 %v452, %v435
    %v456 = vmul.f32 %v452, %v450
    %v457 = vadd.f32 %v110, %v453
    %v458 = vadd.f32 %v111, %v454
    %v459 = vadd.f32 %v112, %v455
    %v460 = vadd.f32 %v113, %v456
    %461 = vst [vmem:[#allocation11] sm:$0xff] %v457
    %462 = vst [vmem:[#allocation11 + $0x8] sm:$0xff] %v458
    %463 = vst [vmem:[#allocation11 + $0x10] sm:$0xff] %v459
    %464 = vst [vmem:[#allocation11 + $0x18] sm:$0xff] %v460
    // Predicated region
    $region54: #{tpu_custom_call.1} parent=1 // pred_check
      _
    $region55: #{tpu_custom_call.1} parent=1 // pred_check_branch
      %466 = sbr.rel (0) target = $region57
    $region56: #{tpu_custom_call.1} parent=1 // pred_region
      %468 = vsyncadd [#allocation4], 0
      %s469 = sshll.u32 [#allocation11], 4
      %s470 = int_to_ptr.vmem [resolvable:$true] %s469
      %s471 = sshll.u32 %s8, 4
      %s472 = int_to_ptr.hbm [resolvable:$true] %s471
      %477 = dma.vmem_to_hbm [thread:$0]  %s470, 512, %s472, [#allocation4], 128, 128, 8
    $region57: #{tpu_custom_call.1} parent=1 // pred_fallthru
      _
    // Predicated region
    $region58: #{tpu_custom_call.1} parent=1 // pred_check
      _
    $region59: #{tpu_custom_call.1} parent=1 // pred_check_branch
      %479 = sbr.rel (0) target = $region61
    $region60: #{tpu_custom_call.1} parent=1 // pred_region
      %481 = dma.done [#allocation4], 512
    $region61: #{tpu_custom_call.1} parent=1 // pred_fallthru
      _
    %482 = vsyncpa [#allocation3], 1
    %483 = vsyncpa [#allocation6], 1
    %484 = vsyncpa [#allocation9], 1
    %485 = vsyncpa [#allocation4], 1

</llo_original>
